<compile_context>
chip_gen: v7x
topology: tpu7x:2x2x1
jax: 0.10.0
libtpu: 0.0.40
codegen_flags: <defaults>
</compile_context>

<pallas_src>
import functools

import jax
import jax.numpy as jnp
from jax.experimental import pallas as pl
from jax.experimental.pallas import tpu as pltpu

_NEG_BIG = -1e30   # bias for padded action rows; exp(-1e30 - m) == 0 in f32
_LN_EPS = 1e-5     # PyTorch nn.LayerNorm default


def dqn_kernel(x_ref, w1_ref, w2_ref, w3_ref, wo_ref,
               b1_ref, b2_ref, b3_ref, bo_ref, out_ref, *, dims):
    """Whole forward pass for one batch tile, fully resident in VMEM.

    Transposed layout: activations are (feature, batch_tile) with batch on lanes.
    """
    d1, d2, d3, dout = dims

    # Cast the f32 input to bf16 in-kernel (free; avoids a separate XLA cast pass).
    xb = x_ref[...].astype(jnp.bfloat16)                     # (bt, n_input)

    def relu_ln(z, d):
        # z: (d, bt) f32.  ReLU, then LayerNorm over the feature (sublane) axis.
        z = jnp.maximum(z, 0.0)
        inv_d = 1.0 / d
        mu = jnp.sum(z, axis=0, keepdims=True) * inv_d       # (1, bt)
        c = z - mu
        var = jnp.sum(c * c, axis=0, keepdims=True) * inv_d  # two-pass: better numerics
        zn = c * jax.lax.rsqrt(var + _LN_EPS)
        return zn.astype(jnp.bfloat16)                       # back to bf16 for the MXU

    # Layer 1: W1 (d1, n_in) contracted with x (bt, n_in) on n_in -> (d1, bt).
    z = jax.lax.dot_general(
        w1_ref[...], xb,
        dimension_numbers=(((1,), (1,)), ((), ())),
        preferred_element_type=jnp.float32) + b1_ref[...]
    h = relu_ln(z, d1)

    z = jnp.dot(w2_ref[...], h, preferred_element_type=jnp.float32) + b2_ref[...]
    h = relu_ln(z, d2)

    z = jnp.dot(w3_ref[...], h, preferred_element_type=jnp.float32) + b3_ref[...]
    h = relu_ln(z, d3)

    # Output linear + numerically stable softmax over the sublane-padded action dim.
    logits = jnp.dot(wo_ref[...], h, preferred_element_type=jnp.float32) + bo_ref[...]
    m = jnp.max(logits, axis=0, keepdims=True)                # (1, bt)
    e = jnp.exp(logits - m)                                   # only dout(=8) rows of exps
    inv = pl.reciprocal(jnp.sum(e, axis=0, keepdims=True), approx=True)
    out_ref[...] = (e * inv).astype(out_ref.dtype)


def fold_and_pack_params(params, n_actions):
    """Fold each LayerNorm's affine into the following Linear, pad the action dim
    to a sublane multiple (8), transpose weights to (out, in) for the lane=batch
    layout, and cast matmul weights to bf16.  Input weights use [in, out]."""
    w1 = params["w1"]
    b1 = params["b1"].reshape(-1)
    w2 = params["g1"].reshape(-1, 1) * params["w2"]
    b2 = params["b2"].reshape(-1) + params["be1"].reshape(-1) @ params["w2"]
    w3 = params["g2"].reshape(-1, 1) * params["w3"]
    b3 = params["b3"].reshape(-1) + params["be2"].reshape(-1) @ params["w3"]
    wo = params["g3"].reshape(-1, 1) * params["wo"]
    bo = params["bo"].reshape(-1) + params["be3"].reshape(-1) @ params["wo"]

    d1, d2, d3 = w1.shape[1], w2.shape[1], w3.shape[1]
    dout = max(8, ((n_actions + 7) // 8) * 8)   # pad actions to a sublane multiple

    # Padded action rows: zero weights + very negative bias -> exp(pad - m) == 0,
    # so the softmax over the real actions is unchanged (logit math stays in f32).
    wo_pad = jnp.zeros((wo.shape[0], dout), jnp.float32).at[:, :n_actions].set(wo)
    bo_pad = jnp.full((dout,), _NEG_BIG, jnp.float32).at[:n_actions].set(bo)

    folded = dict(
        w1=w1.T.astype(jnp.bfloat16),       # (d1, n_in)
        w2=w2.T.astype(jnp.bfloat16),       # (d2, d1)
        w3=w3.T.astype(jnp.bfloat16),       # (d3, d2)
        wo=wo_pad.T.astype(jnp.bfloat16),   # (dout, d3)
        b1=b1.reshape(-1, 1).astype(jnp.float32),
        b2=b2.reshape(-1, 1).astype(jnp.float32),
        b3=b3.reshape(-1, 1).astype(jnp.float32),
        bo=bo_pad.reshape(-1, 1).astype(jnp.float32),
    )
    return folded, (d1, d2, d3, dout)


def _tensorcores_per_chip():
    """Rough generation detection: chips exposing 2 TensorCores behind one device."""
    try:
        kind = (getattr(jax.devices()[0], "device_kind", "") or "").lower()
    except Exception:
        kind = ""
    return 2 if any(t in kind for t in ("v7", "v5p", "v5 p", "v4")) else 1


def _pick_batch_tile(B, n_input, dout):
    """Generation-aware tile pick.

    Single grid step whenever the tile fits the VMEM budget (on 1-TC chips a
    second step is pure per-step overhead).  For 2-TC chips, split only when
    per-core work is large enough to beat the ~0.35us/step pipeline overhead,
    using lane-dense multiples of 128 rows."""
    # Per-row VMEM: f32 x tile + f32 out tile, double-buffered, plus headroom
    # for in-kernel intermediates; budgeted well under v7x's 32 MiB default scope.
    bytes_per_row = 2 * 4 * (n_input + dout) + 1024
    vmem_budget = 24 << 20
    max_rows = max(8, vmem_budget // bytes_per_row)

    n_tc = _tensorcores_per_chip()
    if (n_tc == 1 or B < 4096) and B <= max_rows:
        return B                                 # one step, block == full array
    # Split path: >= n_tc steps, tile a multiple of 128 (lane-dense stores).
    target = min(max_rows, max(128, B // n_tc))
    tile = (target // 128) * 128
    while tile >= 128:
        if B % tile == 0:
            return tile
        tile -= 128
    return B                                     # fallback: single full-batch block


def dqn_forward(x, params, *, batch_tile=None, return_padded=False):
    """params: dict with w1..w3, b1..b3, g1..g3, be1..be3, wo, bo.
    Weights stored [in, out]; biases / gammas / betas as [1, dim].
    x: (B, n_input) f32.  Returns (B, n_actions) softmax probabilities, or the
    raw padded (dout, B) kernel output (actions on sublanes) if return_padded."""
    B, n_input = x.shape
    n_actions = params["wo"].shape[1]
    folded, dims = fold_and_pack_params(params, n_actions)
    d1, d2, d3, dout = dims

    if batch_tile is None:
        batch_tile = _pick_batch_tile(B, n_input, dout)
    assert B % batch_tile == 0, (B, batch_tile)
    grid = (B // batch_tile,)

    def rep(arr):
        return pl.BlockSpec(arr.shape, lambda i: (0, 0))

    in_specs = [
        pl.BlockSpec((batch_tile, n_input), lambda i: (i, 0)),   # x rows
        rep(folded["w1"]), rep(folded["w2"]), rep(folded["w3"]), rep(folded["wo"]),
        rep(folded["b1"]), rep(folded["b2"]), rep(folded["b3"]), rep(folded["bo"]),
    ]
    out_specs = pl.BlockSpec((dout, batch_tile), lambda i: (0, i))

    weight_bytes = sum(folded[k].size * 2 for k in ("w1", "w2", "w3", "wo"))
    bias_bytes = sum(folded[k].size * 4 for k in ("b1", "b2", "b3", "bo"))
    tile_bytes = 2 * (batch_tile * n_input * 4 + dout * batch_tile * 4
                      + weight_bytes + bias_bytes)
    vmem_limit = int(min(32 << 20, max(8 << 20, tile_bytes + (4 << 20))))

    flops = 2 * B * (n_input * d1 + d1 * d2 + d2 * d3 + d3 * dout)
    transcendentals = B * (dout + 4)          # exps + 3 rsqrt + 1 reciprocal per row
    bytes_accessed = (x.size * 4 + weight_bytes + bias_bytes + B * dout * 4)

    out_padded = pl.pallas_call(
        functools.partial(dqn_kernel, dims=dims),
        out_shape=jax.ShapeDtypeStruct((dout, B), jnp.float32),
        grid_spec=pltpu.PrefetchScalarGridSpec(
            num_scalar_prefetch=0,
            grid=grid,
            in_specs=in_specs,
            out_specs=out_specs,
        ),
        compiler_params=pltpu.CompilerParams(
            dimension_semantics=("parallel",),
            vmem_limit_bytes=vmem_limit,
        ),
        cost_estimate=pl.CostEstimate(
            flops=flops,
            transcendentals=transcendentals,
            bytes_accessed=bytes_accessed,
        ),
    )(x, folded["w1"], folded["w2"], folded["w3"], folded["wo"],
      folded["b1"], folded["b2"], folded["b3"], folded["bo"])

    if return_padded:
        return out_padded                      # (dout, B): actions on sublanes
    # Tiny (dout=8 x B) slice+transpose back to the module's (B, n_actions) layout.
    return out_padded[:n_actions, :].T


def init_dqn_params(key, n_input, n_actions, hidden_dims):
    """Deterministic synthetic init (shapes match nn.Linear / nn.LayerNorm).
    Non-trivial gamma/beta are used so the affine-folding path is exercised."""
    assert len(hidden_dims) == 3  # kernel is specialized to the module's 3 hidden layers
    params = {}
    cur = n_input
    keys = jax.random.split(key, len(hidden_dims) + 1)
    for idx, dim in enumerate(hidden_dims, start=1):
        kw, kb, kg, kbe = jax.random.split(keys[idx - 1], 4)
        scale = 1.0 / jnp.sqrt(cur)
        # stored as [in, out] (transposed vs. PyTorch's [out, in])
        params[f"w{idx}"] = jax.random.uniform(kw, (cur, dim), jnp.float32, -scale, scale)
        params[f"b{idx}"] = jax.random.uniform(kb, (1, dim), jnp.float32, -scale, scale)
        params[f"g{idx}"] = 1.0 + 0.1 * jax.random.normal(kg, (1, dim), jnp.float32)
        params[f"be{idx}"] = 0.1 * jax.random.normal(kbe, (1, dim), jnp.float32)
        cur = dim
    kw, kb = jax.random.split(keys[-1])
    scale = 1.0 / jnp.sqrt(cur)
    params["wo"] = jax.random.uniform(kw, (cur, n_actions), jnp.float32, -scale, scale)
    params["bo"] = jax.random.uniform(kb, (1, n_actions), jnp.float32, -scale, scale)
    return params


def dqn_reference(x, params):
    """Plain-JAX f32 reference matching the PyTorch module (unfolded params)."""
    eps = 1e-5
    h = x
    for k in range(1, 4):
        z = h @ params[f"w{k}"] + params[f"b{k}"]
        z = jnp.maximum(z, 0.0)
        mu = jnp.mean(z, axis=-1, keepdims=True)
        var = jnp.mean((z - mu) ** 2, axis=-1, keepdims=True)
        h = (z - mu) / jnp.sqrt(var + eps) * params[f"g{k}"] + params[f"be{k}"]
    logits = h @ params["wo"] + params["bo"]
    return jax.nn.softmax(logits, axis=-1)


if __name__ == "__main__":
    # Small shapes consistent with the module: n_input=16, hidden=[32,32,32], 4 actions.
    # B=128: overhead-bound, so the auto-picked grid is a single step (batch on lanes).
    B, n_input, n_actions = 128, 16, 4
    hidden_dims = [32, 32, 32]

    key = jax.random.PRNGKey(0)
    kx, kp = jax.random.split(key)
    x = jax.random.normal(kx, (B, n_input), jnp.float32)
    params = init_dqn_params(kp, n_input, n_actions, hidden_dims)

    out = dqn_forward(x, params)
    out = jax.block_until_ready(out)

    ref = dqn_reference(x, params)
    assert out.shape == (B, n_actions)
    # bf16 matmul inputs + EUP approximate reciprocal => looser tolerances vs f32 ref.
    assert jnp.allclose(jnp.sum(out, axis=-1), 1.0, atol=1e-2)
    assert jnp.allclose(out, ref, atol=3e-2, rtol=3e-2)

    print("KERNEL_OK")
</pallas_src>

<mosaic_0001>
module attributes {stable_mosaic.version = 11 : i64} {
  func.func @dqn_kernel(%arg0: i32, %arg1: memref<128x16xf32, #tpu.memory_space<vmem>>, %arg2: memref<32x16xbf16, #tpu.memory_space<vmem>>, %arg3: memref<32x32xbf16, #tpu.memory_space<vmem>>, %arg4: memref<32x32xbf16, #tpu.memory_space<vmem>>, %arg5: memref<8x32xbf16, #tpu.memory_space<vmem>>, %arg6: memref<32x1xf32, #tpu.memory_space<vmem>>, %arg7: memref<32x1xf32, #tpu.memory_space<vmem>>, %arg8: memref<32x1xf32, #tpu.memory_space<vmem>>, %arg9: memref<8x1xf32, #tpu.memory_space<vmem>>, %arg10: memref<8x128xf32, #tpu.memory_space<vmem>>) attributes {dimension_semantics = [#tpu.dimension_semantics<parallel>], iteration_bounds = array<i64: 1>, scalar_prefetch = 0 : i64, scratch_operands = 0 : i64, tpu.core_type = #tpu.core_type<tc>, window_params = [{transform_indices = @transform_0, window_bounds = array<i64: 128, 16>}, {pipeline_mode = #tpu.pipeline_mode<synchronous>, transform_indices = @transform_1, window_bounds = array<i64: 32, 16>}, {pipeline_mode = #tpu.pipeline_mode<synchronous>, transform_indices = @transform_2, window_bounds = array<i64: 32, 32>}, {pipeline_mode = #tpu.pipeline_mode<synchronous>, transform_indices = @transform_3, window_bounds = array<i64: 32, 32>}, {pipeline_mode = #tpu.pipeline_mode<synchronous>, transform_indices = @transform_4, window_bounds = array<i64: 8, 32>}, {pipeline_mode = #tpu.pipeline_mode<synchronous>, transform_indices = @transform_5, window_bounds = array<i64: 32, 1>}, {pipeline_mode = #tpu.pipeline_mode<synchronous>, transform_indices = @transform_6, window_bounds = array<i64: 32, 1>}, {pipeline_mode = #tpu.pipeline_mode<synchronous>, transform_indices = @transform_7, window_bounds = array<i64: 32, 1>}, {pipeline_mode = #tpu.pipeline_mode<synchronous>, transform_indices = @transform_8, window_bounds = array<i64: 8, 1>}, {transform_indices = @transform_9, window_bounds = array<i64: 8, 128>}]} {
    %c0 = arith.constant 0 : index
    %c0_0 = arith.constant 0 : index
    %0 = vector.load %arg1[%c0, %c0_0] : memref<128x16xf32, #tpu.memory_space<vmem>>, vector<128x16xf32>
    %1 = arith.truncf %0 : vector<128x16xf32> to vector<128x16xbf16>
    %c0_1 = arith.constant 0 : index
    %c0_2 = arith.constant 0 : index
    %2 = vector.load %arg2[%c0_1, %c0_2] : memref<32x16xbf16, #tpu.memory_space<vmem>>, vector<32x16xbf16>
    %cst = arith.constant dense<0.000000e+00> : vector<32x128xf32>
    %3 = tpu.matmul %2, %1, %cst {dimension_numbers = #tpu.dot_dimension_numbers<[1], [1], [0], [0], [0, 0, 1, 0], [], []>} : vector<32x16xbf16>, vector<128x16xbf16>, vector<32x128xf32> -> vector<32x128xf32>
    %c0_3 = arith.constant 0 : index
    %c0_4 = arith.constant 0 : index
    %4 = vector.load %arg6[%c0_3, %c0_4] : memref<32x1xf32, #tpu.memory_space<vmem>>, vector<32x1xf32>
    %5 = vector.broadcast %4 : vector<32x1xf32> to vector<32x128xf32>
    %6 = arith.addf %3, %5 : vector<32x128xf32>
    %cst_5 = arith.constant 0.000000e+00 : f32
    %7 = vector.broadcast %cst_5 : f32 to vector<32x128xf32>
    %8 = arith.maximumf %6, %7 : vector<32x128xf32>
    %cst_6 = arith.constant dense<0.000000e+00> : vector<128xf32>
    %9 = vector.multi_reduction <add>, %8, %cst_6 [0] : vector<32x128xf32> to vector<128xf32>
    %10 = vector.shape_cast %9 : vector<128xf32> to vector<1x128xf32>
    %cst_7 = arith.constant 3.125000e-02 : f32
    %11 = vector.broadcast %cst_7 : f32 to vector<1x128xf32>
    %12 = arith.mulf %10, %11 : vector<1x128xf32>
    %13 = vector.broadcast %12 : vector<1x128xf32> to vector<32x128xf32>
    %14 = arith.subf %8, %13 : vector<32x128xf32>
    %15 = arith.mulf %14, %14 : vector<32x128xf32>
    %cst_8 = arith.constant dense<0.000000e+00> : vector<128xf32>
    %16 = vector.multi_reduction <add>, %15, %cst_8 [0] : vector<32x128xf32> to vector<128xf32>
    %17 = vector.shape_cast %16 : vector<128xf32> to vector<1x128xf32>
    %cst_9 = arith.constant 3.125000e-02 : f32
    %18 = vector.broadcast %cst_9 : f32 to vector<1x128xf32>
    %19 = arith.mulf %17, %18 : vector<1x128xf32>
    %cst_10 = arith.constant 9.99999974E-6 : f32
    %20 = vector.broadcast %cst_10 : f32 to vector<1x128xf32>
    %21 = arith.addf %19, %20 : vector<1x128xf32>
    %22 = math.rsqrt %21 : vector<1x128xf32>
    %23 = vector.broadcast %22 : vector<1x128xf32> to vector<32x128xf32>
    %24 = arith.mulf %14, %23 : vector<32x128xf32>
    %25 = arith.truncf %24 : vector<32x128xf32> to vector<32x128xbf16>
    %c0_11 = arith.constant 0 : index
    %c0_12 = arith.constant 0 : index
    %26 = vector.load %arg3[%c0_11, %c0_12] : memref<32x32xbf16, #tpu.memory_space<vmem>>, vector<32x32xbf16>
    %cst_13 = arith.constant dense<0.000000e+00> : vector<32x128xf32>
    %27 = tpu.matmul %26, %25, %cst_13 {dimension_numbers = #tpu.dot_dimension_numbers<[1], [0], [0], [1], [0, 0, 1, 1], [], []>} : vector<32x32xbf16>, vector<32x128xbf16>, vector<32x128xf32> -> vector<32x128xf32>
    %c0_14 = arith.constant 0 : index
    %c0_15 = arith.constant 0 : index
    %28 = vector.load %arg7[%c0_14, %c0_15] : memref<32x1xf32, #tpu.memory_space<vmem>>, vector<32x1xf32>
    %29 = vector.broadcast %28 : vector<32x1xf32> to vector<32x128xf32>
    %30 = arith.addf %27, %29 : vector<32x128xf32>
    %cst_16 = arith.constant 0.000000e+00 : f32
    %31 = vector.broadcast %cst_16 : f32 to vector<32x128xf32>
    %32 = arith.maximumf %30, %31 : vector<32x128xf32>
    %cst_17 = arith.constant dense<0.000000e+00> : vector<128xf32>
    %33 = vector.multi_reduction <add>, %32, %cst_17 [0] : vector<32x128xf32> to vector<128xf32>
    %34 = vector.shape_cast %33 : vector<128xf32> to vector<1x128xf32>
    %cst_18 = arith.constant 3.125000e-02 : f32
    %35 = vector.broadcast %cst_18 : f32 to vector<1x128xf32>
    %36 = arith.mulf %34, %35 : vector<1x128xf32>
    %37 = vector.broadcast %36 : vector<1x128xf32> to vector<32x128xf32>
    %38 = arith.subf %32, %37 : vector<32x128xf32>
    %39 = arith.mulf %38, %38 : vector<32x128xf32>
    %cst_19 = arith.constant dense<0.000000e+00> : vector<128xf32>
    %40 = vector.multi_reduction <add>, %39, %cst_19 [0] : vector<32x128xf32> to vector<128xf32>
    %41 = vector.shape_cast %40 : vector<128xf32> to vector<1x128xf32>
    %cst_20 = arith.constant 3.125000e-02 : f32
    %42 = vector.broadcast %cst_20 : f32 to vector<1x128xf32>
    %43 = arith.mulf %41, %42 : vector<1x128xf32>
    %cst_21 = arith.constant 9.99999974E-6 : f32
    %44 = vector.broadcast %cst_21 : f32 to vector<1x128xf32>
    %45 = arith.addf %43, %44 : vector<1x128xf32>
    %46 = math.rsqrt %45 : vector<1x128xf32>
    %47 = vector.broadcast %46 : vector<1x128xf32> to vector<32x128xf32>
    %48 = arith.mulf %38, %47 : vector<32x128xf32>
    %49 = arith.truncf %48 : vector<32x128xf32> to vector<32x128xbf16>
    %c0_22 = arith.constant 0 : index
    %c0_23 = arith.constant 0 : index
    %50 = vector.load %arg4[%c0_22, %c0_23] : memref<32x32xbf16, #tpu.memory_space<vmem>>, vector<32x32xbf16>
    %cst_24 = arith.constant dense<0.000000e+00> : vector<32x128xf32>
    %51 = tpu.matmul %50, %49, %cst_24 {dimension_numbers = #tpu.dot_dimension_numbers<[1], [0], [0], [1], [0, 0, 1, 1], [], []>} : vector<32x32xbf16>, vector<32x128xbf16>, vector<32x128xf32> -> vector<32x128xf32>
    %c0_25 = arith.constant 0 : index
    %c0_26 = arith.constant 0 : index
    %52 = vector.load %arg8[%c0_25, %c0_26] : memref<32x1xf32, #tpu.memory_space<vmem>>, vector<32x1xf32>
    %53 = vector.broadcast %52 : vector<32x1xf32> to vector<32x128xf32>
    %54 = arith.addf %51, %53 : vector<32x128xf32>
    %cst_27 = arith.constant 0.000000e+00 : f32
    %55 = vector.broadcast %cst_27 : f32 to vector<32x128xf32>
    %56 = arith.maximumf %54, %55 : vector<32x128xf32>
    %cst_28 = arith.constant dense<0.000000e+00> : vector<128xf32>
    %57 = vector.multi_reduction <add>, %56, %cst_28 [0] : vector<32x128xf32> to vector<128xf32>
    %58 = vector.shape_cast %57 : vector<128xf32> to vector<1x128xf32>
    %cst_29 = arith.constant 3.125000e-02 : f32
    %59 = vector.broadcast %cst_29 : f32 to vector<1x128xf32>
    %60 = arith.mulf %58, %59 : vector<1x128xf32>
    %61 = vector.broadcast %60 : vector<1x128xf32> to vector<32x128xf32>
    %62 = arith.subf %56, %61 : vector<32x128xf32>
    %63 = arith.mulf %62, %62 : vector<32x128xf32>
    %cst_30 = arith.constant dense<0.000000e+00> : vector<128xf32>
    %64 = vector.multi_reduction <add>, %63, %cst_30 [0] : vector<32x128xf32> to vector<128xf32>
    %65 = vector.shape_cast %64 : vector<128xf32> to vector<1x128xf32>
    %cst_31 = arith.constant 3.125000e-02 : f32
    %66 = vector.broadcast %cst_31 : f32 to vector<1x128xf32>
    %67 = arith.mulf %65, %66 : vector<1x128xf32>
    %cst_32 = arith.constant 9.99999974E-6 : f32
    %68 = vector.broadcast %cst_32 : f32 to vector<1x128xf32>
    %69 = arith.addf %67, %68 : vector<1x128xf32>
    %70 = math.rsqrt %69 : vector<1x128xf32>
    %71 = vector.broadcast %70 : vector<1x128xf32> to vector<32x128xf32>
    %72 = arith.mulf %62, %71 : vector<32x128xf32>
    %73 = arith.truncf %72 : vector<32x128xf32> to vector<32x128xbf16>
    %c0_33 = arith.constant 0 : index
    %c0_34 = arith.constant 0 : index
    %74 = vector.load %arg5[%c0_33, %c0_34] : memref<8x32xbf16, #tpu.memory_space<vmem>>, vector<8x32xbf16>
    %cst_35 = arith.constant dense<0.000000e+00> : vector<8x128xf32>
    %75 = tpu.matmul %74, %73, %cst_35 {dimension_numbers = #tpu.dot_dimension_numbers<[1], [0], [0], [1], [0, 0, 1, 1], [], []>} : vector<8x32xbf16>, vector<32x128xbf16>, vector<8x128xf32> -> vector<8x128xf32>
    %c0_36 = arith.constant 0 : index
    %c0_37 = arith.constant 0 : index
    %76 = vector.load %arg9[%c0_36, %c0_37] : memref<8x1xf32, #tpu.memory_space<vmem>>, vector<8x1xf32>
    %77 = vector.broadcast %76 : vector<8x1xf32> to vector<8x128xf32>
    %78 = arith.addf %75, %77 : vector<8x128xf32>
    %cst_38 = arith.constant dense<0xFF800000> : vector<128xf32>
    %79 = vector.multi_reduction <maximumf>, %78, %cst_38 [0] : vector<8x128xf32> to vector<128xf32>
    %80 = vector.shape_cast %79 : vector<128xf32> to vector<1x128xf32>
    %81 = vector.broadcast %80 : vector<1x128xf32> to vector<8x128xf32>
    %82 = arith.subf %78, %81 : vector<8x128xf32>
    %83 = math.exp %82 : vector<8x128xf32>
    %cst_39 = arith.constant dense<0.000000e+00> : vector<128xf32>
    %84 = vector.multi_reduction <add>, %83, %cst_39 [0] : vector<8x128xf32> to vector<128xf32>
    %85 = vector.shape_cast %84 : vector<128xf32> to vector<1x128xf32>
    %86 = tpu.reciprocal %85 {approx = true} : vector<1x128xf32> -> vector<1x128xf32>
    %87 = vector.broadcast %86 : vector<1x128xf32> to vector<8x128xf32>
    %88 = arith.mulf %83, %87 : vector<8x128xf32>
    %c0_40 = arith.constant 0 : index
    %c0_41 = arith.constant 0 : index
    %89 = vector.load %arg10[%c0_40, %c0_41] : memref<8x128xf32, #tpu.memory_space<vmem>>, vector<8x128xf32>
    tpu.vector_store %arg10[%c0_40, %c0_41], %88 {strides = array<i32>} : memref<8x128xf32, #tpu.memory_space<vmem>>, vector<8x128xf32>,
    return
  }
  func.func @transform_0(%arg0: i32) -> (i32, i32) {
    %c0_i32 = arith.constant 0 : i32
    %c0_i32_0 = arith.constant 0 : i32
    return %arg0, %c0_i32 : i32, i32
  }
  func.func @transform_1(%arg0: i32) -> (i32, i32) {
    %c0_i32 = arith.constant 0 : i32
    %c0_i32_0 = arith.constant 0 : i32
    %c0_i32_1 = arith.constant 0 : i32
    return %c0_i32, %c0_i32_0 : i32, i32
  }
  func.func @transform_2(%arg0: i32) -> (i32, i32) {
    %c0_i32 = arith.constant 0 : i32
    %c0_i32_0 = arith.constant 0 : i32
    %c0_i32_1 = arith.constant 0 : i32
    return %c0_i32, %c0_i32_0 : i32, i32
  }
  func.func @transform_3(%arg0: i32) -> (i32, i32) {
    %c0_i32 = arith.constant 0 : i32
    %c0_i32_0 = arith.constant 0 : i32
    %c0_i32_1 = arith.constant 0 : i32
    return %c0_i32, %c0_i32_0 : i32, i32
  }
  func.func @transform_4(%arg0: i32) -> (i32, i32) {
    %c0_i32 = arith.constant 0 : i32
    %c0_i32_0 = arith.constant 0 : i32
    %c0_i32_1 = arith.constant 0 : i32
    return %c0_i32, %c0_i32_0 : i32, i32
  }
  func.func @transform_5(%arg0: i32) -> (i32, i32) {
    %c0_i32 = arith.constant 0 : i32
    %c0_i32_0 = arith.constant 0 : i32
    %c0_i32_1 = arith.constant 0 : i32
    return %c0_i32, %c0_i32_0 : i32, i32
  }
  func.func @transform_6(%arg0: i32) -> (i32, i32) {
    %c0_i32 = arith.constant 0 : i32
    %c0_i32_0 = arith.constant 0 : i32
    %c0_i32_1 = arith.constant 0 : i32
    return %c0_i32, %c0_i32_0 : i32, i32
  }
  func.func @transform_7(%arg0: i32) -> (i32, i32) {
    %c0_i32 = arith.constant 0 : i32
    %c0_i32_0 = arith.constant 0 : i32
    %c0_i32_1 = arith.constant 0 : i32
    return %c0_i32, %c0_i32_0 : i32, i32
  }
  func.func @transform_8(%arg0: i32) -> (i32, i32) {
    %c0_i32 = arith.constant 0 : i32
    %c0_i32_0 = arith.constant 0 : i32
    %c0_i32_1 = arith.constant 0 : i32
    return %c0_i32, %c0_i32_0 : i32, i32
  }
  func.func @transform_9(%arg0: i32) -> (i32, i32) {
    %c0_i32 = arith.constant 0 : i32
    %c0_i32_0 = arith.constant 0 : i32
    return %c0_i32, %arg0 : i32, i32
  }
}

</mosaic_0001>

<llo_original>
// kernel: tpu_custom_call.1
$region0: #{tpu_custom_call.1}
  #allocation0 [shape = 'u32[]', space=smem, size = 0x4, offset = 0x4, fixed_abs, tag = 'smem constant byte address 0x4 - core index']
  #allocation1 [shape = 'u32[144,128]{1,0:T(1,128)}', space=vmem, size = 0x12000, scoped, tag = 'internal scratch']
  %s0 = inlined_call_operand.vmem [shape: f32[128,16], index: 0, kind: input, shape index: {}]
  %s1 = inlined_call_operand.vmem [shape: bf16[32,16], index: 1, kind: input, shape index: {}]
  %s2 = inlined_call_operand.vmem [shape: bf16[32,32], index: 2, kind: input, shape index: {}]
  %s3 = inlined_call_operand.vmem [shape: bf16[32,32], index: 3, kind: input, shape index: {}]
  %s4 = inlined_call_operand.vmem [shape: bf16[8,32], index: 4, kind: input, shape index: {}]
  %s5 = inlined_call_operand.vmem [shape: f32[32,1], index: 5, kind: input, shape index: {}]
  %s6 = inlined_call_operand.vmem [shape: f32[32,1], index: 6, kind: input, shape index: {}]
  %s7 = inlined_call_operand.vmem [shape: f32[32,1], index: 7, kind: input, shape index: {}]
  %s8 = inlined_call_operand.vmem [shape: f32[8,1], index: 8, kind: input, shape index: {}]
  %s9 = inlined_call_operand.hbm [shape: f32[8,128], index: 9, kind: output, shape index: {}]
  %s10 = sld [smem:[#allocation0]]
  $region46: #{tpu_custom_call.1} parent=0
    _
  %s12 = ssub.s32 1, %s10
  %s13 = scalar_select 0, %s12, %s10
  $region1: #{tpu_custom_call.1} parent=0
    #allocation2 [shape = 'u8[4096]{0}', space=vmem, size = 0x1000, scoped, tag = 'output window, operand 0, single buffered']
    #allocation3 [shape = 's32[1]{0}', space=sflag, size = 0x4, scoped, tag = 'scoped memory for tpu_custom_call.1']
    %14 = vsyncpa [#allocation3], 0
    // Predicated region
    $region2: #{tpu_custom_call.1} parent=1 // pred_check
      _
    $region3: #{tpu_custom_call.1} parent=1 // pred_check_branch
      %16 = sbr.rel (0) target = $region5
    $region4: #{tpu_custom_call.1} parent=1 // pred_region
      _
    $region5: #{tpu_custom_call.1} parent=1 // pred_fallthru
      _
    // Predicated region
    $region6: #{tpu_custom_call.1} parent=1 // pred_check
      _
    $region7: #{tpu_custom_call.1} parent=1 // pred_check_branch
      %18 = sbr.rel (0) target = $region9
    $region8: #{tpu_custom_call.1} parent=1 // pred_region
      _
    $region9: #{tpu_custom_call.1} parent=1 // pred_fallthru
      _
    // Predicated region
    $region10: #{tpu_custom_call.1} parent=1 // pred_check
      _
    $region11: #{tpu_custom_call.1} parent=1 // pred_check_branch
      %20 = sbr.rel (0) target = $region13
    $region12: #{tpu_custom_call.1} parent=1 // pred_region
      _
    $region13: #{tpu_custom_call.1} parent=1 // pred_fallthru
      _
    // Predicated region
    $region14: #{tpu_custom_call.1} parent=1 // pred_check
      _
    $region15: #{tpu_custom_call.1} parent=1 // pred_check_branch
      %22 = sbr.rel (0) target = $region17
    $region16: #{tpu_custom_call.1} parent=1 // pred_region
      _
    $region17: #{tpu_custom_call.1} parent=1 // pred_fallthru
      _
    // Predicated region
    $region18: #{tpu_custom_call.1} parent=1 // pred_check
      _
    $region19: #{tpu_custom_call.1} parent=1 // pred_check_branch
      %24 = sbr.rel (0) target = $region21
    $region20: #{tpu_custom_call.1} parent=1 // pred_region
      _
    $region21: #{tpu_custom_call.1} parent=1 // pred_fallthru
      _
    // Predicated region
    $region22: #{tpu_custom_call.1} parent=1 // pred_check
      _
    $region23: #{tpu_custom_call.1} parent=1 // pred_check_branch
      %26 = sbr.rel (0) target = $region25
    $region24: #{tpu_custom_call.1} parent=1 // pred_region
      _
    $region25: #{tpu_custom_call.1} parent=1 // pred_fallthru
      _
    // Predicated region
    $region26: #{tpu_custom_call.1} parent=1 // pred_check
      _
    $region27: #{tpu_custom_call.1} parent=1 // pred_check_branch
      %28 = sbr.rel (0) target = $region29
    $region28: #{tpu_custom_call.1} parent=1 // pred_region
      _
    $region29: #{tpu_custom_call.1} parent=1 // pred_fallthru
      _
    // Predicated region
    $region30: #{tpu_custom_call.1} parent=1 // pred_check
      _
    $region31: #{tpu_custom_call.1} parent=1 // pred_check_branch
      %30 = sbr.rel (0) target = $region33
    $region32: #{tpu_custom_call.1} parent=1 // pred_region
      _
    $region33: #{tpu_custom_call.1} parent=1 // pred_fallthru
      _
    // Predicated region
    $region34: #{tpu_custom_call.1} parent=1 // pred_check
      _
    $region35: #{tpu_custom_call.1} parent=1 // pred_check_branch
      %32 = sbr.rel (0) target = $region37
    $region36: #{tpu_custom_call.1} parent=1 // pred_region
      _
    $region37: #{tpu_custom_call.1} parent=1 // pred_fallthru
      _
    %v34 = vld [vmem:[%s0] sm:$0xff]
    %v35 = vld [vmem:[%s0 + $0x8] sm:$0xff]
    %v36 = vld [vmem:[%s0 + $0x10] sm:$0xff]
    %v37 = vld [vmem:[%s0 + $0x18] sm:$0xff]
    %v38 = vld [vmem:[%s0 + $0x20] sm:$0xff]
    %v39 = vld [vmem:[%s0 + $0x28] sm:$0xff]
    %v40 = vld [vmem:[%s0 + $0x30] sm:$0xff]
    %v41 = vld [vmem:[%s0 + $0x38] sm:$0xff]
    %v42 = vld [vmem:[%s0 + $0x40] sm:$0xff]
    %v43 = vld [vmem:[%s0 + $0x48] sm:$0xff]
    %v44 = vld [vmem:[%s0 + $0x50] sm:$0xff]
    %v45 = vld [vmem:[%s0 + $0x58] sm:$0xff]
    %v46 = vld [vmem:[%s0 + $0x60] sm:$0xff]
    %v47 = vld [vmem:[%s0 + $0x68] sm:$0xff]
    %v48 = vld [vmem:[%s0 + $0x70] sm:$0xff]
    %v49 = vld [vmem:[%s0 + $0x78] sm:$0xff]
    %v50 = vpack.c.bf16 %v35, %v34
    %v51 = vpack.c.bf16 %v37, %v36
    %v52 = vpack.c.bf16 %v39, %v38
    %v53 = vpack.c.bf16 %v41, %v40
    %v54 = vpack.c.bf16 %v43, %v42
    %v55 = vpack.c.bf16 %v45, %v44
    %v56 = vpack.c.bf16 %v47, %v46
    %v57 = vpack.c.bf16 %v49, %v48
    %v58 = vld [vmem:[%s1] sm:$0xf]
    %v59 = vld [vmem:[%s1 + $0x4] sm:$0xf]
    %v60 = vld [vmem:[%s1 + $0x8] sm:$0xf]
    %v61 = vld [vmem:[%s1 + $0xc] sm:$0xf]
    %v62 = vld [vmem:[%s5] sm:$0xff]
    %v63 = vld [vmem:[%s5 + $0x8] sm:$0xff]
    %v64 = vld [vmem:[%s5 + $0x10] sm:$0xff]
    %v65 = vld [vmem:[%s5 + $0x18] sm:$0xff]
    %67 = vset.pattern.permute.xlu0 0
    %68 = vperm.xlu0 %67, %v62
    %v69 = vpop.permute.xlu0 %68
    %72 = vset.pattern.permute.xlu0 0
    %73 = vperm.xlu0 %72, %v63
    %v74 = vpop.permute.xlu0 %73
    %77 = vset.pattern.permute.xlu0 0
    %78 = vperm.xlu0 %77, %v64
    %v79 = vpop.permute.xlu0 %78
    %82 = vset.pattern.permute.xlu0 0
    %83 = vperm.xlu0 %82, %v65
    %v84 = vpop.permute.xlu0 %83
    %v90 = vunpack.c.l.b16 %v58
    %v91 = vunpack.c.l.b16 %v59
    %v92 = vunpack.c.l.b16 %v60
    %v93 = vunpack.c.l.b16 %v61
    %v94 = vpack.c.b16 %v91, %v90
    %v95 = vpack.c.b16 %v93, %v92
    %vm96 = vcmask 130048
    %v98 = vsel %vm96, %v94, 0
    %v101 = vsel %vm96, %v95, 0
    %v104 = vsel %vm96, %v50, 0
    %v107 = vsel %vm96, %v51, 0
    %v110 = vsel %vm96, %v52, 0
    %v113 = vsel %vm96, %v53, 0
    %v116 = vsel %vm96, %v54, 0
    %v119 = vsel %vm96, %v55, 0
    %v122 = vsel %vm96, %v56, 0
    %v125 = vsel %vm96, %v57, 0
    %127 = vmatprep.subr.bf16.mxu0 0
    %128 = vmatpush1.bf16.xpose.msra.mxu0 %v104
    %129 = vmatprep.subr.bf16.mxu0 0
    %130 = vmatpush1.bf16.xpose.msra.mxu0 %v107
    %131 = vmatprep.subr.bf16.mxu0 0
    %132 = vmatpush1.bf16.xpose.msra.mxu0 %v110
    %133 = vmatprep.subr.bf16.mxu0 0
    %134 = vmatpush1.bf16.xpose.msra.mxu0 %v113
    %135 = vmatprep.subr.bf16.mxu0 0
    %136 = vmatpush1.bf16.xpose.msra.mxu0 %v116
    %137 = vmatprep.subr.bf16.mxu0 0
    %138 = vmatpush1.bf16.xpose.msra.mxu0 %v119
    %139 = vmatprep.subr.bf16.mxu0 0
    %140 = vmatpush1.bf16.xpose.msra.mxu0 %v122
    %141 = vmatprep.subr.bf16.mxu0 0
    %142 = vmatpush1.bf16.xpose.msra.mxu0 %v125
    %143 = vmatprep.subr.bf16.mxu0 0
    %144 = vmatpush1.bf16.xpose.msra.mxu0 0
    %145 = vmatprep.subr.bf16.mxu0 0
    %146 = vmatpush1.bf16.xpose.msra.mxu0 0
    %147 = vmatprep.subr.bf16.mxu0 0
    %148 = vmatpush1.bf16.xpose.msra.mxu0 0
    %149 = vmatprep.subr.bf16.mxu0 0
    %150 = vmatpush1.bf16.xpose.msra.mxu0 0
    %151 = vmatprep.subr.bf16.mxu0 0
    %152 = vmatpush1.bf16.xpose.msra.mxu0 0
    %153 = vmatprep.subr.bf16.mxu0 0
    %154 = vmatpush1.bf16.xpose.msra.mxu0 0
    %155 = vmatprep.subr.bf16.mxu0 0
    %156 = vmatpush1.bf16.xpose.msra.mxu0 0
    %157 = vmatprep.subr.bf16.mxu0 0
    %158 = vmatpush1.bf16.xpose.msra.mxu0 0
    %159 = vmatprep.mubr.bf16.mxu0 0
    %160 = vmatmul.mubr.bf16.gmra.mrb[0].mxu0 %v98
    %v161 = vpop.f32.mrb[0].mxu0
    %v162 = vadd.f32 %v69, %v161
    %v163 = vpop.f32.mrb[0].mxu0
    %v164 = vpop.f32.mrb[0].mxu0
    %v165 = vadd.f32 %v74, %v164
    %v166 = vpop.f32.mrb[0].mxu0
    %167 = vmatprep.mubr.bf16.mxu0 0
    %168 = vmatmul.mubr.bf16.gmra.mrb[0].mxu0 %v101
    %v169 = vpop.f32.mrb[0].mxu0
    %v170 = vadd.f32 %v79, %v169
    %v171 = vpop.f32.mrb[0].mxu0
    %v172 = vpop.f32.mrb[0].mxu0
    %v173 = vadd.f32 %v84, %v172
    %v174 = vpop.f32.mrb[0].mxu0
    %175 = vdwg.mxu0
    %v176 = vmax.f32 %v162, 0.0
    %v177 = vmax.f32 %v165, 0.0
    %v178 = vmax.f32 %v170, 0.0
    %v179 = vmax.f32 %v173, 0.0
    %v180 = vadd.f32 %v176, %v177
    %v181 = vadd.f32 %v180, %v178
    %v182 = vadd.f32 %v181, %v179
    %v183 = vrot.slane %v182, 4
    %v184 = vadd.f32 %v182, %v183
    %v185 = vrot.slane %v184, 2
    %v186 = vadd.f32 %v184, %v185
    %v187 = vrot.slane %v186, 1
    %v188 = vadd.f32 %v186, %v187
    %v189 = vmul.f32 %v188, 0.03125
    %v190 = vsub.f32 %v176, %v189
    %v191 = vsub.f32 %v177, %v189
    %v192 = vsub.f32 %v178, %v189
    %v193 = vsub.f32 %v179, %v189
    %v194 = vmul.f32 %v190, %v190
    %v195 = vmul.f32 %v191, %v191
    %v196 = vmul.f32 %v192, %v192
    %v197 = vmul.f32 %v193, %v193
    %v198 = vadd.f32 %v194, %v195
    %v199 = vadd.f32 %v198, %v196
    %v200 = vadd.f32 %v199, %v197
    %v201 = vrot.slane %v200, 4
    %v202 = vadd.f32 %v200, %v201
    %v203 = vrot.slane %v202, 2
    %v204 = vadd.f32 %v202, %v203
    %v205 = vrot.slane %v204, 1
    %v206 = vadd.f32 %v204, %v205
    %v207 = vmul.f32 %v206, 0.03125
    %v208 = vadd.f32 %v207, 1e-05
    %v209 = vrsqrt.pop %v208
    %v210 = vmul.f32 %v190, %v209
    %v211 = vmul.f32 %v191, %v209
    %v212 = vmul.f32 %v192, %v209
    %v213 = vmul.f32 %v193, %v209
    %v214 = vpack.c.bf16 %v211, %v210
    %v215 = vpack.c.bf16 %v213, %v212
    %v216 = vld [vmem:[%s2] sm:$0xf]
    %v217 = vld [vmem:[%s2 + $0x4] sm:$0xf]
    %v218 = vld [vmem:[%s2 + $0x8] sm:$0xf]
    %v219 = vld [vmem:[%s2 + $0xc] sm:$0xf]
    %v220 = vld [vmem:[%s6] sm:$0xff]
    %v221 = vld [vmem:[%s6 + $0x8] sm:$0xff]
    %v222 = vld [vmem:[%s6 + $0x10] sm:$0xff]
    %v223 = vld [vmem:[%s6 + $0x18] sm:$0xff]
    %225 = vset.pattern.permute.xlu0 0
    %226 = vperm.xlu0 %225, %v220
    %v227 = vpop.permute.xlu0 %226
    %230 = vset.pattern.permute.xlu0 0
    %231 = vperm.xlu0 %230, %v221
    %v232 = vpop.permute.xlu0 %231
    %235 = vset.pattern.permute.xlu0 0
    %236 = vperm.xlu0 %235, %v222
    %v237 = vpop.permute.xlu0 %236
    %240 = vset.pattern.permute.xlu0 0
    %241 = vperm.xlu0 %240, %v223
    %v242 = vpop.permute.xlu0 %241
    %v248 = vunpack.c.l.b16 %v216
    %v249 = vunpack.c.l.b16 %v217
    %v250 = vunpack.c.l.b16 %v218
    %v251 = vunpack.c.l.b16 %v219
    %v252 = vpack.c.b16 %v249, %v248
    %v253 = vpack.c.b16 %v251, %v250
    %vm254 = vcmask 261120
    %v256 = vsel %vm254, %v252, 0
    %v259 = vsel %vm254, %v253, 0
    %261 = vmatprep.subr.bf16.mxu0 0
    %262 = vmatpush1.bf16.msra.mxu0 %v214
    %263 = vmatprep.subr.bf16.mxu0 0
    %264 = vmatpush1.bf16.msra.mxu0 %v215
    %265 = vmatprep.subr.bf16.mxu0 0
    %266 = vmatpush1.bf16.msra.mxu0 0
    %267 = vmatprep.subr.bf16.mxu0 0
    %268 = vmatpush1.bf16.msra.mxu0 0
    %269 = vmatprep.subr.bf16.mxu0 0
    %270 = vmatpush1.bf16.msra.mxu0 0
    %271 = vmatprep.subr.bf16.mxu0 0
    %272 = vmatpush1.bf16.msra.mxu0 0
    %273 = vmatprep.subr.bf16.mxu0 0
    %274 = vmatpush1.bf16.msra.mxu0 0
    %275 = vmatprep.subr.bf16.mxu0 0
    %276 = vmatpush1.bf16.msra.mxu0 0
    %277 = vmatprep.subr.bf16.mxu0 0
    %278 = vmatpush1.bf16.msra.mxu0 0
    %279 = vmatprep.subr.bf16.mxu0 0
    %280 = vmatpush1.bf16.msra.mxu0 0
    %281 = vmatprep.subr.bf16.mxu0 0
    %282 = vmatpush1.bf16.msra.mxu0 0
    %283 = vmatprep.subr.bf16.mxu0 0
    %284 = vmatpush1.bf16.msra.mxu0 0
    %285 = vmatprep.subr.bf16.mxu0 0
    %286 = vmatpush1.bf16.msra.mxu0 0
    %287 = vmatprep.subr.bf16.mxu0 0
    %288 = vmatpush1.bf16.msra.mxu0 0
    %289 = vmatprep.subr.bf16.mxu0 0
    %290 = vmatpush1.bf16.msra.mxu0 0
    %291 = vmatprep.subr.bf16.mxu0 0
    %292 = vmatpush1.bf16.msra.mxu0 0
    %293 = vmatprep.mubr.bf16.mxu0 0
    %294 = vmatmul.mubr.bf16.gmra.mrb[0].mxu0 %v256
    %v295 = vpop.f32.mrb[0].mxu0
    %v296 = vadd.f32 %v227, %v295
    %v297 = vpop.f32.mrb[0].mxu0
    %v298 = vpop.f32.mrb[0].mxu0
    %v299 = vadd.f32 %v232, %v298
    %v300 = vpop.f32.mrb[0].mxu0
    %301 = vmatprep.mubr.bf16.mxu0 0
    %302 = vmatmul.mubr.bf16.gmra.mrb[0].mxu0 %v259
    %v303 = vpop.f32.mrb[0].mxu0
    %v304 = vadd.f32 %v237, %v303
    %v305 = vpop.f32.mrb[0].mxu0
    %v306 = vpop.f32.mrb[0].mxu0
    %v307 = vadd.f32 %v242, %v306
    %v308 = vpop.f32.mrb[0].mxu0
    %309 = vdwg.mxu0
    %v310 = vmax.f32 %v296, 0.0
    %v311 = vmax.f32 %v299, 0.0
    %v312 = vmax.f32 %v304, 0.0
    %v313 = vmax.f32 %v307, 0.0
    %v314 = vadd.f32 %v310, %v311
    %v315 = vadd.f32 %v314, %v312
    %v316 = vadd.f32 %v315, %v313
    %v317 = vrot.slane %v316, 4
    %v318 = vadd.f32 %v316, %v317
    %v319 = vrot.slane %v318, 2
    %v320 = vadd.f32 %v318, %v319
    %v321 = vrot.slane %v320, 1
    %v322 = vadd.f32 %v320, %v321
    %v323 = vmul.f32 %v322, 0.03125
    %v324 = vsub.f32 %v310, %v323
    %v325 = vsub.f32 %v311, %v323
    %v326 = vsub.f32 %v312, %v323
    %v327 = vsub.f32 %v313, %v323
    %v328 = vmul.f32 %v324, %v324
    %v329 = vmul.f32 %v325, %v325
    %v330 = vmul.f32 %v326, %v326
    %v331 = vmul.f32 %v327, %v327
    %v332 = vadd.f32 %v328, %v329
    %v333 = vadd.f32 %v332, %v330
    %v334 = vadd.f32 %v333, %v331
    %v335 = vrot.slane %v334, 4
    %v336 = vadd.f32 %v334, %v335
    %v337 = vrot.slane %v336, 2
    %v338 = vadd.f32 %v336, %v337
    %v339 = vrot.slane %v338, 1
    %v340 = vadd.f32 %v338, %v339
    %v341 = vmul.f32 %v340, 0.03125
    %v342 = vadd.f32 %v341, 1e-05
    %v343 = vrsqrt.pop %v342
    %v344 = vmul.f32 %v324, %v343
    %v345 = vmul.f32 %v325, %v343
    %v346 = vmul.f32 %v326, %v343
    %v347 = vmul.f32 %v327, %v343
    %v348 = vpack.c.bf16 %v345, %v344
    %v349 = vpack.c.bf16 %v347, %v346
    %v350 = vld [vmem:[%s3] sm:$0xf]
    %v351 = vld [vmem:[%s3 + $0x4] sm:$0xf]
    %v352 = vld [vmem:[%s3 + $0x8] sm:$0xf]
    %v353 = vld [vmem:[%s3 + $0xc] sm:$0xf]
    %v354 = vld [vmem:[%s7] sm:$0xff]
    %v355 = vld [vmem:[%s7 + $0x8] sm:$0xff]
    %v356 = vld [vmem:[%s7 + $0x10] sm:$0xff]
    %v357 = vld [vmem:[%s7 + $0x18] sm:$0xff]
    %359 = vset.pattern.permute.xlu0 0
    %360 = vperm.xlu0 %359, %v354
    %v361 = vpop.permute.xlu0 %360
    %364 = vset.pattern.permute.xlu0 0
    %365 = vperm.xlu0 %364, %v355
    %v366 = vpop.permute.xlu0 %365
    %369 = vset.pattern.permute.xlu0 0
    %370 = vperm.xlu0 %369, %v356
    %v371 = vpop.permute.xlu0 %370
    %374 = vset.pattern.permute.xlu0 0
    %375 = vperm.xlu0 %374, %v357
    %v376 = vpop.permute.xlu0 %375
    %v382 = vunpack.c.l.b16 %v350
    %v383 = vunpack.c.l.b16 %v351
    %v384 = vunpack.c.l.b16 %v352
    %v385 = vunpack.c.l.b16 %v353
    %v386 = vpack.c.b16 %v383, %v382
    %v387 = vpack.c.b16 %v385, %v384
    %v389 = vsel %vm254, %v386, 0
    %v392 = vsel %vm254, %v387, 0
    %394 = vmatprep.subr.bf16.mxu0 0
    %395 = vmatpush1.bf16.msra.mxu0 %v348
    %396 = vmatprep.subr.bf16.mxu0 0
    %397 = vmatpush1.bf16.msra.mxu0 %v349
    %398 = vmatprep.subr.bf16.mxu0 0
    %399 = vmatpush1.bf16.msra.mxu0 0
    %400 = vmatprep.subr.bf16.mxu0 0
    %401 = vmatpush1.bf16.msra.mxu0 0
    %402 = vmatprep.subr.bf16.mxu0 0
    %403 = vmatpush1.bf16.msra.mxu0 0
    %404 = vmatprep.subr.bf16.mxu0 0
    %405 = vmatpush1.bf16.msra.mxu0 0
    %406 = vmatprep.subr.bf16.mxu0 0
    %407 = vmatpush1.bf16.msra.mxu0 0
    %408 = vmatprep.subr.bf16.mxu0 0
    %409 = vmatpush1.bf16.msra.mxu0 0
    %410 = vmatprep.subr.bf16.mxu0 0
    %411 = vmatpush1.bf16.msra.mxu0 0
    %412 = vmatprep.subr.bf16.mxu0 0
    %413 = vmatpush1.bf16.msra.mxu0 0
    %414 = vmatprep.subr.bf16.mxu0 0
    %415 = vmatpush1.bf16.msra.mxu0 0
    %416 = vmatprep.subr.bf16.mxu0 0
    %417 = vmatpush1.bf16.msra.mxu0 0
    %418 = vmatprep.subr.bf16.mxu0 0
    %419 = vmatpush1.bf16.msra.mxu0 0
    %420 = vmatprep.subr.bf16.mxu0 0
    %421 = vmatpush1.bf16.msra.mxu0 0
    %422 = vmatprep.subr.bf16.mxu0 0
    %423 = vmatpush1.bf16.msra.mxu0 0
    %424 = vmatprep.subr.bf16.mxu0 0
    %425 = vmatpush1.bf16.msra.mxu0 0
    %426 = vmatprep.mubr.bf16.mxu0 0
    %427 = vmatmul.mubr.bf16.gmra.mrb[0].mxu0 %v389
    %v428 = vpop.f32.mrb[0].mxu0
    %v429 = vadd.f32 %v361, %v428
    %v430 = vpop.f32.mrb[0].mxu0
    %v431 = vpop.f32.mrb[0].mxu0
    %v432 = vadd.f32 %v366, %v431
    %v433 = vpop.f32.mrb[0].mxu0
    %434 = vmatprep.mubr.bf16.mxu0 0
    %435 = vmatmul.mubr.bf16.gmra.mrb[0].mxu0 %v392
    %v436 = vpop.f32.mrb[0].mxu0
    %v437 = vadd.f32 %v371, %v436
    %v438 = vpop.f32.mrb[0].mxu0
    %v439 = vpop.f32.mrb[0].mxu0
    %v440 = vadd.f32 %v376, %v439
    %v441 = vpop.f32.mrb[0].mxu0
    %442 = vdwg.mxu0
    %v443 = vmax.f32 %v429, 0.0
    %v444 = vmax.f32 %v432, 0.0
    %v445 = vmax.f32 %v437, 0.0
    %v446 = vmax.f32 %v440, 0.0
    %v447 = vadd.f32 %v443, %v444
    %v448 = vadd.f32 %v447, %v445
    %v449 = vadd.f32 %v448, %v446
    %v450 = vrot.slane %v449, 4
    %v451 = vadd.f32 %v449, %v450
    %v452 = vrot.slane %v451, 2
    %v453 = vadd.f32 %v451, %v452
    %v454 = vrot.slane %v453, 1
    %v455 = vadd.f32 %v453, %v454
    %v456 = vmul.f32 %v455, 0.03125
    %v457 = vsub.f32 %v443, %v456
    %v458 = vsub.f32 %v444, %v456
    %v459 = vsub.f32 %v445, %v456
    %v460 = vsub.f32 %v446, %v456
    %v461 = vmul.f32 %v457, %v457
    %v462 = vmul.f32 %v458, %v458
    %v463 = vmul.f32 %v459, %v459
    %v464 = vmul.f32 %v460, %v460
    %v465 = vadd.f32 %v461, %v462
    %v466 = vadd.f32 %v465, %v463
    %v467 = vadd.f32 %v466, %v464
    %v468 = vrot.slane %v467, 4
    %v469 = vadd.f32 %v467, %v468
    %v470 = vrot.slane %v469, 2
    %v471 = vadd.f32 %v469, %v470
    %v472 = vrot.slane %v471, 1
    %v473 = vadd.f32 %v471, %v472
    %v474 = vmul.f32 %v473, 0.03125
    %v475 = vadd.f32 %v474, 1e-05
    %v476 = vrsqrt.pop %v475
    %v477 = vmul.f32 %v457, %v476
    %v478 = vmul.f32 %v458, %v476
    %v479 = vmul.f32 %v459, %v476
    %v480 = vmul.f32 %v460, %v476
    %v481 = vpack.c.bf16 %v478, %v477
    %v482 = vpack.c.bf16 %v480, %v479
    %v483 = vld [vmem:[%s4] sm:$0xf]
    %v484 = vld [vmem:[%s8] sm:$0xff]
    %486 = vset.pattern.permute.xlu0 0
    %487 = vperm.xlu0 %486, %v484
    %v488 = vpop.permute.xlu0 %487
    %v491 = vsel %vm254, %v483, 0
    %493 = vmatprep.subr.bf16.mxu0 0
    %494 = vmatpush1.bf16.msra.mxu0 %v481
    %495 = vmatprep.subr.bf16.mxu0 0
    %496 = vmatpush1.bf16.msra.mxu0 %v482
    %497 = vmatprep.subr.bf16.mxu0 0
    %498 = vmatpush1.bf16.msra.mxu0 0
    %499 = vmatprep.subr.bf16.mxu0 0
    %500 = vmatpush1.bf16.msra.mxu0 0
    %501 = vmatprep.subr.bf16.mxu0 0
    %502 = vmatpush1.bf16.msra.mxu0 0
    %503 = vmatprep.subr.bf16.mxu0 0
    %504 = vmatpush1.bf16.msra.mxu0 0
    %505 = vmatprep.subr.bf16.mxu0 0
    %506 = vmatpush1.bf16.msra.mxu0 0
    %507 = vmatprep.subr.bf16.mxu0 0
    %508 = vmatpush1.bf16.msra.mxu0 0
    %509 = vmatprep.subr.bf16.mxu0 0
    %510 = vmatpush1.bf16.msra.mxu0 0
    %511 = vmatprep.subr.bf16.mxu0 0
    %512 = vmatpush1.bf16.msra.mxu0 0
    %513 = vmatprep.subr.bf16.mxu0 0
    %514 = vmatpush1.bf16.msra.mxu0 0
    %515 = vmatprep.subr.bf16.mxu0 0
    %516 = vmatpush1.bf16.msra.mxu0 0
    %517 = vmatprep.subr.bf16.mxu0 0
    %518 = vmatpush1.bf16.msra.mxu0 0
    %519 = vmatprep.subr.bf16.mxu0 0
    %520 = vmatpush1.bf16.msra.mxu0 0
    %521 = vmatprep.subr.bf16.mxu0 0
    %522 = vmatpush1.bf16.msra.mxu0 0
    %523 = vmatprep.subr.bf16.mxu0 0
    %524 = vmatpush1.bf16.msra.mxu0 0
    %525 = vmatprep.mubr.bf16.mxu0 0
    %526 = vmatmul.mubr.bf16.gmra.mrb[0].mxu0 %v491
    %v527 = vpop.f32.mrb[0].mxu0
    %v528 = vadd.f32 %v488, %v527
    %v529 = vpop.f32.mrb[0].mxu0
    %v530 = vpop.f32.mrb[0].mxu0
    %v531 = vpop.f32.mrb[0].mxu0
    %532 = vdwg.mxu0
    %v533 = vrot.slane %v528, 4
    %v534 = vmax.f32 %v528, %v533
    %v535 = vrot.slane %v534, 2
    %v536 = vmax.f32 %v534, %v535
    %v537 = vrot.slane %v536, 1
    %v538 = vmax.f32 %v536, %v537
    %v539 = vsub.f32 %v528, %v538
    %v540 = vmul.f32 %v539, 1.442695
    %v541 = vpow.pop %v540
    %v542 = vrot.slane %v541, 4
    %v543 = vadd.f32 %v541, %v542
    %v544 = vrot.slane %v543, 2
    %v545 = vadd.f32 %v543, %v544
    %v546 = vrot.slane %v545, 1
    %v547 = vadd.f32 %v545, %v546
    %v548 = vrcp.pop %v547
    %v549 = vmul.f32 %v541, %v548
    %550 = vst [vmem:[#allocation2] sm:$0xff] %v549
    // Predicated region
    $region38: #{tpu_custom_call.1} parent=1 // pred_check
      _
    $region39: #{tpu_custom_call.1} parent=1 // pred_check_branch
      %552 = sbr.rel (0) target = $region41
    $region40: #{tpu_custom_call.1} parent=1 // pred_region
      %s554 = ssub.s32 128, 128
      %555 = vsyncadd [#allocation3], %s554
      %s557 = sshll.u32 [#allocation2], 4
      %s558 = int_to_ptr.vmem [resolvable:$true] %s557
      %560 = dma.vmem_to_hbm [thread:$0]  %s558, 128, %s9, [#allocation3]
    $region41: #{tpu_custom_call.1} parent=1 // pred_fallthru
      _
    // Predicated region
    $region42: #{tpu_custom_call.1} parent=1 // pred_check
      _
    $region43: #{tpu_custom_call.1} parent=1 // pred_check_branch
      %562 = sbr.rel (0) target = $region45
    $region44: #{tpu_custom_call.1} parent=1 // pred_region
      %563 = dma.done [#allocation3], 128
    $region45: #{tpu_custom_call.1} parent=1 // pred_fallthru
      _
    %564 = vsyncpa [#allocation3], 1

</llo_original>
